<compile_context>
chip_gen: v5e
topology: v5e:2x2
jax: 0.10.0
libtpu: 0.0.40
codegen_flags: <defaults>
</compile_context>

<pallas_src>
import functools
from typing import NamedTuple

import jax
import jax.numpy as jnp
from jax.experimental import pallas as pl
from jax.experimental.pallas import tpu as pltpu


def _round_up(x, m):
    return ((x + m - 1) // m) * m


def _sublane_multiple(dtype):
    # Sub-32-bit dtypes pack along sublanes: 8 rows f32, 16 bf16, 32 int8/fp8.
    return max(8, 32 // jnp.dtype(dtype).itemsize)


class PreparedWeight(NamedTuple):
    wt: jax.Array  # [Kp, Np] weight, pre-transposed, cast to MXU dtype, padded
    n: int         # out_features
    k: int         # in_features
    tn: int        # N tile
    tk: int        # K tile


def prepare_dual_linear_weight(weight, *, compute_dtype=jnp.bfloat16,
                               tn=512, tk=1024):
    """One-time weight prep (amortize to init): cast to the MXU feed dtype,
    transpose [N,K]->[K,N] and pad to tile boundaries, so the per-forward call
    pays no HBM transpose/pad of the weight."""
    N, K = weight.shape
    np128 = _round_up(N, 128)
    k128 = _round_up(K, 128)
    tn = min(tn, np128)
    tk = min(tk, k128)
    # v7x has 2 TensorCores: when all of N would be a single tile but can be
    # split into two lane-aligned tiles, do so, so the "parallel" N axis has at
    # least 2 programs.  (Weight/x HBM traffic is unchanged by this split under
    # the resident-x scheme; v5e/v6e just see one extra grid step.)
    if tn >= np128 and np128 >= 256 and np128 % 256 == 0:
        tn = np128 // 2
    Np = _round_up(N, tn)
    Kp = _round_up(K, tk)
    wt = weight.astype(compute_dtype).T  # [K, N]
    if (Kp, Np) != (K, N):
        # K zero-padding contributes 0 to the contraction; N padding is sliced
        # off the output in the wrapper.
        wt = jnp.pad(wt, ((0, Kp - K), (0, Np - N)))
    return PreparedWeight(wt=wt, n=N, k=K, tn=tn, tk=tk)


def _x_chunk(x_ref, k, tk, x_resident):
    if x_resident:
        return x_ref[:, pl.ds(pl.multiple_of(k * tk, 128), tk)]
    return x_ref[...]


def _dl_kernel_direct(x_ref, wt_ref, o_ref, *, tk, x_resident):
    # f32 output: accumulate directly into the resident output tile (no scratch,
    # no epilogue copy).
    k = pl.program_id(2)
    part = jnp.dot(_x_chunk(x_ref, k, tk, x_resident), wt_ref[...],
                   preferred_element_type=jnp.float32)

    @pl.when(k == 0)
    def _():
        o_ref[...] = part

    @pl.when(k != 0)
    def _():
        o_ref[...] += part


def _dl_kernel_acc(x_ref, wt_ref, o_ref, acc_ref, *, tk, x_resident):
    # Non-f32 output: f32 VMEM accumulator, cast only at the final K step.
    k = pl.program_id(2)
    part = jnp.dot(_x_chunk(x_ref, k, tk, x_resident), wt_ref[...],
                   preferred_element_type=jnp.float32)

    @pl.when(k == 0)
    def _():
        acc_ref[...] = part

    @pl.when(k != 0)
    def _():
        acc_ref[...] += part

    @pl.when(k == pl.num_programs(2) - 1)
    def _():
        o_ref[...] = acc_ref[...].astype(o_ref.dtype)


def dual_linear_forward(x, weight=None, *, prepared=None,
                        compute_dtype=jnp.bfloat16, out_dtype=None,
                        tm=512, tn=512, tk=1024,
                        x_panel_budget_bytes=24 * 1024 * 1024):
    """DualLinear.forward: F.linear(x, weight) with no bias -> x @ weight.T."""
    if prepared is None:
        assert weight is not None, "need `weight` or `prepared`"
        prepared = prepare_dual_linear_weight(
            weight, compute_dtype=compute_dtype, tn=tn, tk=tk)
    wt, N, K, tn, tk = prepared
    compute_dtype = wt.dtype
    Kp, Np = wt.shape

    M, Kx = x.shape
    assert Kx == K, "in_features mismatch"

    out_dtype = jnp.dtype(out_dtype or x.dtype)
    in_itemsize = jnp.dtype(compute_dtype).itemsize
    out_itemsize = out_dtype.itemsize

    # Dtype-aware sublane rounding for M; grow tm toward the full padded batch
    # so the weight panel streams from HBM as few times as possible.
    sub = _sublane_multiple(compute_dtype)
    tm = min(tm, _round_up(M, sub))
    Mp = _round_up(M, tm)

    # Keep the whole-K x panel resident in VMEM across the N and K grid axes
    # when it fits; otherwise fall back to (tm, tk) blocks re-fetched per k.
    x_resident = 2 * tm * Kp * in_itemsize <= x_panel_budget_bytes

    xq = x.astype(compute_dtype)
    if (Mp, Kp) != (M, K):
        xq = jnp.pad(xq, ((0, Mp - M), (0, Kp - K)))

    grid = (Mp // tm, Np // tn, Kp // tk)

    if x_resident:
        x_spec = pl.BlockSpec((tm, Kp), lambda i, j, k: (i, 0))
    else:
        x_spec = pl.BlockSpec((tm, tk), lambda i, j, k: (i, k))

    acc_in_out = out_dtype == jnp.dtype(jnp.float32)
    if acc_in_out:
        kernel = functools.partial(_dl_kernel_direct, tk=tk, x_resident=x_resident)
        scratch = []
    else:
        kernel = functools.partial(_dl_kernel_acc, tk=tk, x_resident=x_resident)
        scratch = [pltpu.VMEM((tm, tn), jnp.float32)]

    # Rough double-buffered VMEM footprint; raise the scoped limit only if the
    # tiles actually need it (stay within v7x's 64 MiB per-TC VMEM).
    est = (2 * tm * (Kp if x_resident else tk) * in_itemsize
           + 2 * tk * tn * in_itemsize
           + 2 * tm * tn * out_itemsize
           + (0 if acc_in_out else tm * tn * 4))
    vmem_limit = None
    if est > 24 * 1024 * 1024:
        vmem_limit = min(64 * 1024 * 1024,
                         _round_up(int(est * 3 // 2), 1024 * 1024))

    cost = pl.CostEstimate(
        flops=2 * M * N * K,
        transcendentals=0,
        bytes_accessed=(M * K + Kp * Np) * in_itemsize + M * N * out_itemsize,
    )

    out = pl.pallas_call(
        kernel,
        out_shape=jax.ShapeDtypeStruct((Mp, Np), out_dtype),
        grid_spec=pltpu.PrefetchScalarGridSpec(
            num_scalar_prefetch=0,
            grid=grid,
            in_specs=[
                x_spec,
                pl.BlockSpec((tk, tn), lambda i, j, k: (k, j)),
            ],
            out_specs=pl.BlockSpec((tm, tn), lambda i, j, k: (i, j)),
            scratch_shapes=scratch,
        ),
        compiler_params=pltpu.CompilerParams(
            # M/N parallel (megacore split on v7x), K reduction last & arbitrary.
            dimension_semantics=("parallel", "parallel", "arbitrary"),
            vmem_limit_bytes=vmem_limit,
        ),
        cost_estimate=cost,
    )(xq, wt)

    if (Mp, Np) != (M, N):
        out = out[:M, :N]
    return out


if __name__ == "__main__":
    # Deterministic synthetic parameters/inputs (no checkpoint loading).
    key = jax.random.PRNGKey(0)
    k_x, k_w = jax.random.split(key)

    batch, in_features, out_features = 8, 32, 64

    x = jax.random.normal(k_x, (batch, in_features), dtype=jnp.float32)
    # nn.Linear weight: [out_features, in_features]
    weight = jax.random.normal(
        k_w, (out_features, in_features), dtype=jnp.float32) * 0.1

    # ---- default (bf16 MXU feed, f32 accumulate), weight prepared once ----
    prepared = prepare_dual_linear_weight(weight)
    out = dual_linear_forward(x, prepared=prepared)
    out = jax.block_until_ready(out)

    ref = x @ weight.T  # F.linear(x, weight) reference (f32)
    assert out.shape == (batch, out_features)
    assert out.dtype == x.dtype
    # Tolerance sized for bf16 inputs with f32 accumulation.
    assert jnp.allclose(out, ref, atol=5e-2, rtol=5e-2), "bf16-path mismatch"

    # ---- exact f32 path matches tightly ----
    out_f32 = dual_linear_forward(
        x, prepared=prepare_dual_linear_weight(weight, compute_dtype=jnp.float32))
    out_f32 = jax.block_until_ready(out_f32)
    assert jnp.allclose(out_f32, ref, atol=1e-5, rtol=1e-5), "f32-path mismatch"

    # ---- multi-tile case: exercises K accumulation, N tiling and the
    #      non-f32-output (scratch accumulator) path ----
    k_x2, k_w2 = jax.random.split(k_w)
    x2 = jax.random.normal(k_x2, (32, 512), dtype=jnp.float32)
    w2 = jax.random.normal(k_w2, (384, 512), dtype=jnp.float32) * 0.05
    prep2 = prepare_dual_linear_weight(w2, tn=128, tk=128)
    out2 = dual_linear_forward(x2, prepared=prep2, out_dtype=jnp.bfloat16, tm=32)
    out2 = jax.block_until_ready(out2)
    ref2 = jnp.dot(x2.astype(jnp.bfloat16), w2.astype(jnp.bfloat16).T,
                   preferred_element_type=jnp.float32).astype(jnp.bfloat16)
    assert out2.shape == (32, 384) and out2.dtype == jnp.bfloat16
    assert jnp.allclose(out2.astype(jnp.float32), ref2.astype(jnp.float32),
                        atol=2e-2, rtol=2e-2), "multi-tile mismatch"

    print("KERNEL_OK")
</pallas_src>

<mosaic_0001>
module attributes {stable_mosaic.version = 11 : i64} {
  func.func @_dl_kernel_direct(%arg0: i32, %arg1: i32, %arg2: i32, %arg3: memref<16x128xbf16, #tpu.memory_space<vmem>>, %arg4: memref<128x128xbf16, #tpu.memory_space<vmem>>, %arg5: memref<16x128xf32, #tpu.memory_space<vmem>>) attributes {dimension_semantics = [#tpu.dimension_semantics<parallel>, #tpu.dimension_semantics<parallel>, #tpu.dimension_semantics<arbitrary>], iteration_bounds = array<i64: 1, 1, 1>, scalar_prefetch = 0 : i64, scratch_operands = 0 : i64, tpu.core_type = #tpu.core_type<tc>, window_params = [{transform_indices = @transform_0, window_bounds = array<i64: 16, 128>}, {transform_indices = @transform_1, window_bounds = array<i64: 128, 128>}, {transform_indices = @transform_2, window_bounds = array<i64: 16, 128>}]} {
    %c128_i32 = arith.constant 128 : i32
    %0 = arith.muli %arg2, %c128_i32 : i32
    %1 = tpu.assume_multiple %0, 128 : i32
    %c0 = arith.constant 0 : index
    %2 = arith.index_cast %1 : i32 to index
    %3 = vector.load %arg3[%c0, %2] : memref<16x128xbf16, #tpu.memory_space<vmem>>, vector<16x128xbf16>
    %c0_0 = arith.constant 0 : index
    %c0_1 = arith.constant 0 : index
    %4 = vector.load %arg4[%c0_0, %c0_1] : memref<128x128xbf16, #tpu.memory_space<vmem>>, vector<128x128xbf16>
    %cst = arith.constant dense<0.000000e+00> : vector<16x128xf32>
    %5 = tpu.matmul %3, %4, %cst {dimension_numbers = #tpu.dot_dimension_numbers<[1], [0], [0], [1], [0, 0, 1, 1], [], []>} : vector<16x128xbf16>, vector<128x128xbf16>, vector<16x128xf32> -> vector<16x128xf32>
    %c0_i32 = arith.constant 0 : i32
    %6 = arith.cmpi eq, %arg2, %c0_i32 : i32
    %7 = arith.extui %6 : i1 to i32
    %c0_i32_2 = arith.constant 0 : i32
    %8 = arith.cmpi ne, %7, %c0_i32_2 : i32
    scf.if %8 {
      %c0_5 = arith.constant 0 : index
      %c0_6 = arith.constant 0 : index
      %12 = vector.load %arg5[%c0_5, %c0_6] : memref<16x128xf32, #tpu.memory_space<vmem>>, vector<16x128xf32>
      tpu.vector_store %arg5[%c0_5, %c0_6], %5 {strides = array<i32>} : memref<16x128xf32, #tpu.memory_space<vmem>>, vector<16x128xf32>,
    } else {
    }
    %c0_i32_3 = arith.constant 0 : i32
    %9 = arith.cmpi ne, %arg2, %c0_i32_3 : i32
    %10 = arith.extui %9 : i1 to i32
    %c0_i32_4 = arith.constant 0 : i32
    %11 = arith.cmpi ne, %10, %c0_i32_4 : i32
    scf.if %11 {
      %c0_5 = arith.constant 0 : index
      %c0_6 = arith.constant 0 : index
      %12 = vector.load %arg5[%c0_5, %c0_6] : memref<16x128xf32, #tpu.memory_space<vmem>>, vector<16x128xf32>
      %13 = arith.addf %12, %5 : vector<16x128xf32>
      %c0_7 = arith.constant 0 : index
      %c0_8 = arith.constant 0 : index
      %14 = vector.load %arg5[%c0_7, %c0_8] : memref<16x128xf32, #tpu.memory_space<vmem>>, vector<16x128xf32>
      tpu.vector_store %arg5[%c0_7, %c0_8], %13 {strides = array<i32>} : memref<16x128xf32, #tpu.memory_space<vmem>>, vector<16x128xf32>,
    } else {
    }
    return
  }
  func.func @transform_0(%arg0: i32, %arg1: i32, %arg2: i32) -> (i32, i32) {
    %c0_i32 = arith.constant 0 : i32
    %c0_i32_0 = arith.constant 0 : i32
    return %arg0, %c0_i32 : i32, i32
  }
  func.func @transform_1(%arg0: i32, %arg1: i32, %arg2: i32) -> (i32, i32) {
    %c0_i32 = arith.constant 0 : i32
    return %arg2, %arg1 : i32, i32
  }
  func.func @transform_2(%arg0: i32, %arg1: i32, %arg2: i32) -> (i32, i32) {
    %c0_i32 = arith.constant 0 : i32
    return %arg0, %arg1 : i32, i32
  }
}

</mosaic_0001>

<llo_original>
// kernel: tpu_custom_call.1
$region0: #{tpu_custom_call.1}
  #allocation0 [shape = 'u32[]', space=smem, size = 0x4, offset = 0x4, fixed_abs, tag = 'smem constant byte address 0x4 - core index']
  #allocation1 [shape = 'u32[72,128]{1,0:T(1,128)}', space=vmem, size = 0x9000, scoped, tag = 'internal scratch']
  %s0 = inlined_call_operand.hbm [shape: bf16[16,128], index: 0, kind: input, shape index: {}]
  %s1 = inlined_call_operand.hbm [shape: bf16[128,128], index: 1, kind: input, shape index: {}]
  %s2 = inlined_call_operand.hbm [shape: f32[16,128], index: 2, kind: output, shape index: {}]
  %s3 = sld [smem:[#allocation0]]
  $region34: #{tpu_custom_call.1} parent=0
    _
  %s5 = ssub.s32 1, %s3
  %s6 = scalar_select 0, %s5, %s3
  $region1: #{tpu_custom_call.1} parent=0
    #allocation2 [shape = 'u8[4096]{0}', space=vmem, size = 0x1000, scoped, tag = 'input window, operand 0, single buffered']
    #allocation3 [shape = 's32[1]{0}', space=sflag, size = 0x4, scoped, tag = 'scoped memory for tpu_custom_call.1']
    #allocation4 [shape = 's32[1]{0}', space=sflag, size = 0x4, scoped, tag = 'scoped memory for tpu_custom_call.1']
    #allocation5 [shape = 'u8[32768]{0}', space=vmem, size = 0x8000, scoped, tag = 'input window, operand 1, single buffered']
    #allocation6 [shape = 's32[1]{0}', space=sflag, size = 0x4, scoped, tag = 'scoped memory for tpu_custom_call.1']
    #allocation7 [shape = 'u8[8192]{0}', space=vmem, size = 0x2000, scoped, tag = 'output window, operand 0, single buffered']
    %7 = vsyncpa [#allocation3], 0
    %8 = vsyncpa [#allocation6], 0
    %9 = vsyncpa [#allocation4], 0
    // Predicated region
    $region2: #{tpu_custom_call.1} parent=1 // pred_check
      _
    $region3: #{tpu_custom_call.1} parent=1 // pred_check_branch
      %11 = sbr.rel (0) target = $region5
    $region4: #{tpu_custom_call.1} parent=1 // pred_region
      %13 = vsyncadd [#allocation3], 0
      %s14 = sshll.u32 %s0, 4
      %s15 = int_to_ptr.hbm [resolvable:$true] %s14
      %s16 = sshll.u32 [#allocation2], 4
      %s17 = int_to_ptr.vmem [resolvable:$true] %s16
      %22 = dma.hbm_to_vmem [thread:$0]  %s15, 128, %s17, [#allocation3], 64, 64, 4
    $region5: #{tpu_custom_call.1} parent=1 // pred_fallthru
      _
    // Predicated region
    $region6: #{tpu_custom_call.1} parent=1 // pred_check
      _
    $region7: #{tpu_custom_call.1} parent=1 // pred_check_branch
      %24 = sbr.rel (0) target = $region9
    $region8: #{tpu_custom_call.1} parent=1 // pred_region
      %26 = vsyncadd [#allocation6], 0
      %s27 = sshll.u32 %s1, 4
      %s28 = int_to_ptr.hbm [resolvable:$true] %s27
      %s29 = sshll.u32 [#allocation5], 4
      %s30 = int_to_ptr.vmem [resolvable:$true] %s29
      %35 = dma.hbm_to_vmem [thread:$0]  %s28, 1024, %s30, [#allocation6], 64, 64, 4
    $region9: #{tpu_custom_call.1} parent=1 // pred_fallthru
      _
    // Predicated region
    $region10: #{tpu_custom_call.1} parent=1 // pred_check
      _
    $region11: #{tpu_custom_call.1} parent=1 // pred_check_branch
      %37 = sbr.rel (0) target = $region13
    $region12: #{tpu_custom_call.1} parent=1 // pred_region
      %39 = dma.done [#allocation3], 128
    $region13: #{tpu_custom_call.1} parent=1 // pred_fallthru
      _
    // Predicated region
    $region14: #{tpu_custom_call.1} parent=1 // pred_check
      _
    $region15: #{tpu_custom_call.1} parent=1 // pred_check_branch
      %41 = sbr.rel (0) target = $region17
    $region16: #{tpu_custom_call.1} parent=1 // pred_region
      %43 = dma.done [#allocation6], 1024
    $region17: #{tpu_custom_call.1} parent=1 // pred_fallthru
      _
    %s44 = smul.u32 0, 128
    %s45 = sshra.s32 %s44, 7
    %s46 = sand.u32 %s44, 127
    %s47 = smul.addr %s45, 4
    %s48 = scalar_lea.vmem [#allocation2], %s47
    %v49 = vld [vmem:[%s48] sm:$0xf]
    %v50 = vld [vmem:[%s48 + $0x4] sm:$0xf]
    %v51 = vld [vmem:[#allocation5] sm:$0xf]
    %v52 = vld [vmem:[#allocation5 + $0x4] sm:$0xf]
    %v53 = vld [vmem:[#allocation5 + $0x8] sm:$0xf]
    %v54 = vld [vmem:[#allocation5 + $0xc] sm:$0xf]
    %v55 = vld [vmem:[#allocation5 + $0x10] sm:$0xf]
    %v56 = vld [vmem:[#allocation5 + $0x14] sm:$0xf]
    %v57 = vld [vmem:[#allocation5 + $0x18] sm:$0xf]
    %v58 = vld [vmem:[#allocation5 + $0x1c] sm:$0xf]
    %v59 = vld [vmem:[#allocation5 + $0x20] sm:$0xf]
    %v60 = vld [vmem:[#allocation5 + $0x24] sm:$0xf]
    %v61 = vld [vmem:[#allocation5 + $0x28] sm:$0xf]
    %v62 = vld [vmem:[#allocation5 + $0x2c] sm:$0xf]
    %v63 = vld [vmem:[#allocation5 + $0x30] sm:$0xf]
    %v64 = vld [vmem:[#allocation5 + $0x34] sm:$0xf]
    %v65 = vld [vmem:[#allocation5 + $0x38] sm:$0xf]
    %v66 = vld [vmem:[#allocation5 + $0x3c] sm:$0xf]
    %v69 = vunpack.c.l.b16 %v49
    %v70 = vunpack.c.l.b16 %v50
    %v71 = vpack.c.b16 %v70, %v69
    %v89 = vunpack.c.l.b16 %v51
    %v90 = vunpack.c.l.b16 %v52
    %v91 = vunpack.c.l.b16 %v53
    %v92 = vunpack.c.l.b16 %v54
    %v93 = vunpack.c.l.b16 %v55
    %v94 = vunpack.c.l.b16 %v56
    %v95 = vunpack.c.l.b16 %v57
    %v96 = vunpack.c.l.b16 %v58
    %v97 = vunpack.c.l.b16 %v59
    %v98 = vunpack.c.l.b16 %v60
    %v99 = vunpack.c.l.b16 %v61
    %v100 = vunpack.c.l.b16 %v62
    %v101 = vunpack.c.l.b16 %v63
    %v102 = vunpack.c.l.b16 %v64
    %v103 = vunpack.c.l.b16 %v65
    %v104 = vunpack.c.l.b16 %v66
    %v105 = vpack.c.b16 %v90, %v89
    %v106 = vpack.c.b16 %v92, %v91
    %v107 = vpack.c.b16 %v94, %v93
    %v108 = vpack.c.b16 %v96, %v95
    %v109 = vpack.c.b16 %v98, %v97
    %v110 = vpack.c.b16 %v100, %v99
    %v111 = vpack.c.b16 %v102, %v101
    %v112 = vpack.c.b16 %v104, %v103
    %121 = vmatpush.bf16.msra.mxu0 %v112
    %122 = vmatpush.bf16.msra.mxu0 %v111
    %123 = vmatpush.bf16.msra.mxu0 %v110
    %124 = vmatpush.bf16.msra.mxu0 %v109
    %125 = vmatpush.bf16.msra.mxu0 %v108
    %126 = vmatpush.bf16.msra.mxu0 %v107
    %127 = vmatpush.bf16.msra.mxu0 %v106
    %128 = vmatpush.bf16.msra.mxu0 %v105
    %129 = vmatmul.bf16.gmra.mxu0 %v71
    %v130 = vpop.f32.mrf.mxu0
    %v131 = vadd.f32 0.0, %v130
    %v132 = vpop.f32.mrf.mxu0
    %v133 = vadd.f32 0.0, %v132
    %134 = vdwg.mxu0
    %p135 = scmp.eq.s32.totalorder 0, 0
    // Predicated region
    $region18: #{tpu_custom_call.1} parent=1 // pred_check
      %p136 = pneg %p135
    $region19: #{tpu_custom_call.1} parent=1 // pred_check_branch
      %138 = sbr.rel (%p136) target = $region21
    $region20: #{tpu_custom_call.1} parent=1 // pred_region
      %139 = vst [vmem:[#allocation7] sm:$0xff] %v131
      %140 = vst [vmem:[#allocation7 + $0x8] sm:$0xff] %v133
    $region21: #{tpu_custom_call.1} parent=1 // pred_fallthru
      _
    %p141 = scmp.ne.s32.totalorder 0, 0
    // Predicated region
    $region22: #{tpu_custom_call.1} parent=1 // pred_check
      %p142 = pneg %p141
    $region23: #{tpu_custom_call.1} parent=1 // pred_check_branch
      %144 = sbr.rel (%p142) target = $region25
    $region24: #{tpu_custom_call.1} parent=1 // pred_region
      %v145 = vld [vmem:[#allocation7] sm:$0xff]
      %v146 = vld [vmem:[#allocation7 + $0x8] sm:$0xff]
      %v147 = vadd.f32 %v145, %v131
      %v148 = vadd.f32 %v146, %v133
      %149 = vst [vmem:[#allocation7] sm:$0xff] %v147
      %150 = vst [vmem:[#allocation7 + $0x8] sm:$0xff] %v148
    $region25: #{tpu_custom_call.1} parent=1 // pred_fallthru
      _
    // Predicated region
    $region26: #{tpu_custom_call.1} parent=1 // pred_check
      _
    $region27: #{tpu_custom_call.1} parent=1 // pred_check_branch
      %152 = sbr.rel (0) target = $region29
    $region28: #{tpu_custom_call.1} parent=1 // pred_region
      %154 = vsyncadd [#allocation4], 0
      %s155 = sshll.u32 [#allocation7], 4
      %s156 = int_to_ptr.vmem [resolvable:$true] %s155
      %s157 = sshll.u32 %s2, 4
      %s158 = int_to_ptr.hbm [resolvable:$true] %s157
      %163 = dma.vmem_to_hbm [thread:$0]  %s156, 256, %s158, [#allocation4], 128, 128, 8
    $region29: #{tpu_custom_call.1} parent=1 // pred_fallthru
      _
    // Predicated region
    $region30: #{tpu_custom_call.1} parent=1 // pred_check
      _
    $region31: #{tpu_custom_call.1} parent=1 // pred_check_branch
      %165 = sbr.rel (0) target = $region33
    $region32: #{tpu_custom_call.1} parent=1 // pred_region
      %167 = dma.done [#allocation4], 256
    $region33: #{tpu_custom_call.1} parent=1 // pred_fallthru
      _
    %168 = vsyncpa [#allocation3], 1
    %169 = vsyncpa [#allocation6], 1
    %170 = vsyncpa [#allocation4], 1

</llo_original>
